<compile_context>
chip_gen: v5e
topology: v5e:2x2
jax: 0.10.0
libtpu: 0.0.40
codegen_flags: <defaults>
</compile_context>

<pallas_src>
import functools
import math

import jax
import jax.numpy as jnp
import numpy as np
from jax import lax
from jax.experimental import pallas as pl
from jax.experimental.pallas import tpu as pltpu


# ----------------------------- Pallas kernel ------------------------------- #

def _hopfield_pool_kernel(qk_ref, x_ref, xv_ref, wvp_ref, bp_ref, *rest,
                          num_heads, head_dim, num_pattern, step_size,
                          matmul_dtype):
  """One grid step == one batch element.

  qk_ref  : (H*L, C)      step-1 queries pre-contracted with the scaled
                          k-weights (rows head-major: row = h*L + l); shared
                          across the batch (hoisted out of the grid).
  x_ref   : (1, N, C)     this batch's stored patterns (k side).
  xv_ref  : (1, H, N, hd) same stored patterns, head-major ("raw" v).
  wvp_ref : (H, hd, C)    fused Wv^T @ Wproj^T, split head-major on its input side.
  bp_ref  : (1, C)        proj bias.
  rest    : (wk_ref, out_ref) if step_size > 1 else (out_ref,)
            wk_ref : (H, C, hd) scaled k-weights, head-major (steps >= 2 only).
  """
  if step_size > 1:
    wk_ref, out_ref = rest
  else:
    (out_ref,) = rest
    wk_ref = None

  H, hd, L = num_heads, head_dim, num_pattern
  xb = x_ref[0].astype(matmul_dtype)         # (N, C)
  xv = xv_ref[0].astype(matmul_dtype)        # (H, N, hd)
  qk2 = qk_ref[...].astype(matmul_dtype)     # (H*L, C)

  r = None
  for step in range(step_size):
    # Scores for all heads in one 2D MXU op: contract the C axis of both
    # operands directly (no explicit .T / per-head XLU transpose).
    s = lax.dot_general(qk2, xb, (((1,), (1,)), ((), ())),
                        preferred_element_type=jnp.float32)        # (H*L, N)
    # softmax_1 (quiet softmax), numerically stable, rowwise over N.
    m = jnp.maximum(jnp.max(s, axis=-1, keepdims=True), 0.0)
    e = jnp.exp(s - m)
    denom = jnp.sum(e, axis=-1, keepdims=True) + jnp.exp(-m)
    # Exact reciprocal keeps the 1e-4 reference check tight; approx=True would
    # push it to the otherwise-idle EUP slot when the precision budget allows.
    attn = e * pl.reciprocal(denom, approx=False)
    # attn_drop is p=0.0 -> identity.
    # Retrieval, batched over heads (leading batch dims on both operands).
    attn3 = attn.reshape(H, L, attn.shape[-1]).astype(matmul_dtype)
    r = jnp.einsum('hln,hnd->hld', attn3, xv,
                   preferred_element_type=jnp.float32)             # (H, L, hd)
    if step + 1 < step_size:
      # Next step's query is r; re-fold it with the (scaled) k-weights so k
      # itself never needs a head-major relayout inside the kernel.
      qk = jnp.einsum('hle,hce->hlc', r.astype(matmul_dtype),
                      wk_ref[...].astype(matmul_dtype),
                      preferred_element_type=jnp.float32)          # (H, L, C)
      qk2 = qk.reshape(H * L, qk.shape[-1]).astype(matmul_dtype)

  # Epilogue: transpose(1,2).reshape(B, L, C) -> self.v -> self.proj is folded
  # into the single fused weight; the head recombination becomes a batched
  # matmul plus a cheap leading-axis sum (no concatenate / lane relayout).
  partial = jnp.einsum('hld,hdj->hlj', r.astype(matmul_dtype),
                       wvp_ref[...].astype(matmul_dtype),
                       preferred_element_type=jnp.float32)         # (H, L, C)
  out = jnp.sum(partial, axis=0) + bp_ref[...]                     # (L, C)
  # proj_drop is p=0.0 -> identity.
  out_ref[0] = out.astype(out_ref.dtype)


# ------------------------------ JAX wrapper -------------------------------- #

def hopfield_pooling(x, query, w_q, w_k, w_v, w_proj, b_proj, *,
                     num_heads, step_size=1, qk_scale=None,
                     matmul_dtype=jnp.float32):
  """x: (B, N, C); query: (1, L, C); Linear weights are (out, in) like PyTorch.

  matmul_dtype: set to jnp.bfloat16 on v6e/v7x for MXU throughput (accumulation
  stays f32 via preferred_element_type); kept f32 here so the demo check can
  stay at 1e-4.
  """
  assert step_size >= 1
  B, N, C = x.shape
  _, L, _ = query.shape
  H = num_heads
  hd = C // num_heads
  scale = qk_scale if qk_scale is not None else hd ** (-0.5)
  f32 = jnp.float32

  # ---- batch-invariant precompute, hoisted out of the kernel grid ----
  wk_s = (w_k.T * scale).astype(f32)                      # scale folded into Wk^T
  q0 = jnp.dot(query[0].astype(f32), w_q.T.astype(f32))   # (L, C) q projection
  # Step-1 queries pre-contracted with the scaled k-weights (head-major rows):
  #   qk0[h*L + l, c] = sum_e q0[l, h*hd+e] * wk_s[c, h*hd+e]
  qk0 = jnp.einsum('lhe,che->hlc', q0.reshape(L, H, hd),
                   wk_s.reshape(C, H, hd)).reshape(H * L, C)
  # Fused self.v -> self.proj weight, split head-major on its input side.
  w_vp = jnp.dot(w_v.T.astype(f32), w_proj.T.astype(f32))           # (C, C)
  wvp3 = w_vp.reshape(H, hd, C)
  bp = b_proj.reshape(1, C).astype(f32)
  # Head-major view of the stored patterns (the "raw" v inside the loop).
  # Layout plumbing done once in XLA; the kernel never splits lanes / permutes.
  x_hm = x.reshape(B, N, H, hd).transpose(0, 2, 1, 3)               # (B, H, N, hd)

  kernel = functools.partial(
      _hopfield_pool_kernel, num_heads=H, head_dim=hd, num_pattern=L,
      step_size=step_size, matmul_dtype=matmul_dtype)

  in_arrays = [qk0, x, x_hm, wvp3, bp]
  in_specs = [
      pl.BlockSpec((H * L, C), lambda b: (0, 0)),           # qk0 (batch-invariant)
      pl.BlockSpec((1, N, C), lambda b: (b, 0, 0)),         # x, one batch/step
      pl.BlockSpec((1, H, N, hd), lambda b: (b, 0, 0, 0)),  # head-major x ("v")
      pl.BlockSpec((H, hd, C), lambda b: (0, 0, 0)),        # fused Wv.Wproj
      pl.BlockSpec((1, C), lambda b: (0, 0)),               # proj bias
  ]
  if step_size > 1:
    wk_hm = wk_s.reshape(C, H, hd).transpose(1, 0, 2)       # (H, C, hd)
    in_arrays.append(wk_hm)
    in_specs.append(pl.BlockSpec((H, C, hd), lambda b: (0, 0, 0)))

  # Constant-index blocks (weights / qk0 / bias) are fetched once and reused by
  # the pipeline across grid steps; at C=64 VMEM pressure is negligible, so
  # explicit single-buffering (pl.Buffered(1)) is unnecessary here.
  return pl.pallas_call(
      kernel,
      out_shape=jax.ShapeDtypeStruct((B, L, C), x.dtype),
      grid=(B,),
      in_specs=in_specs,
      out_specs=pl.BlockSpec((1, L, C), lambda b: (b, 0, 0)),
      compiler_params=pltpu.CompilerParams(
          dimension_semantics=("parallel",),
          vmem_limit_bytes=32 * 1024 * 1024),
  )(*in_arrays)


# --------------------------- pure-JAX reference ----------------------------- #

def _softmax_1(s):
  m = jnp.maximum(jnp.max(s, axis=-1, keepdims=True), 0.0)
  e = jnp.exp(s - m)
  return e / (jnp.sum(e, axis=-1, keepdims=True) + jnp.exp(-m))


def hopfield_pooling_ref(x, query, w_q, w_k, w_v, w_proj, b_proj, *,
                         num_heads, step_size=1, qk_scale=None):
  B, N, C = x.shape
  _, L, _ = query.shape
  hd = C // num_heads
  scale = qk_scale if qk_scale is not None else hd ** (-0.5)
  queries = jnp.tile(query, (B, 1, 1))
  q = (queries @ w_q.T).reshape(B, L, num_heads, hd).transpose(0, 2, 1, 3)
  k = (x @ w_k.T).reshape(B, N, num_heads, hd).transpose(0, 2, 1, 3)
  v = x.reshape(B, N, num_heads, hd).transpose(0, 2, 1, 3)
  for _ in range(step_size):
    q = q * scale
    attn = _softmax_1(q @ jnp.swapaxes(k, -2, -1))
    q = attn @ v
  out = q.transpose(0, 2, 1, 3).reshape(B, L, C)
  out = out @ w_v.T
  out = out @ w_proj.T + b_proj
  return out


# ---------------------------------- main ------------------------------------ #

if __name__ == "__main__":
  B, N, C = 2, 8, 64
  num_heads = 8
  num_pattern = N        # module's reshapes require num_pattern == N
  step_size = 1

  key = jax.random.PRNGKey(0)
  k0, k1, k2, k3, k4, k5, k6 = jax.random.split(key, 7)

  bound = 1.0 / math.sqrt(C)
  x = jax.random.normal(k0, (B, N, C), dtype=jnp.float32)
  query = jax.random.normal(k1, (1, num_pattern, C), dtype=jnp.float32)  # torch.randn init
  w_q = jax.random.uniform(k2, (C, C), jnp.float32, -bound, bound)
  w_k = jax.random.uniform(k3, (C, C), jnp.float32, -bound, bound)
  w_v = jax.random.uniform(k4, (C, C), jnp.float32, -bound, bound)
  w_proj = jax.random.uniform(k5, (C, C), jnp.float32, -bound, bound)
  b_proj = jax.random.uniform(k6, (C,), jnp.float32, -bound, bound)

  out = hopfield_pooling(x, query, w_q, w_k, w_v, w_proj, b_proj,
                         num_heads=num_heads, step_size=step_size)
  out = jax.block_until_ready(out)

  ref = hopfield_pooling_ref(x, query, w_q, w_k, w_v, w_proj, b_proj,
                             num_heads=num_heads, step_size=step_size)
  np.testing.assert_allclose(np.asarray(out), np.asarray(ref), rtol=1e-4, atol=1e-4)

  # TODO(synk): attn_drop / proj_drop omitted (p=0.0, eval-mode identity);
  # sparsemax / entmax softmax modes not implemented (module uses softmax_1).
  print("KERNEL_OK")
</pallas_src>

<mosaic_0001>
module attributes {stable_mosaic.version = 11 : i64} {
  func.func @_hopfield_pool_kernel(%arg0: i32, %arg1: memref<64x64xf32, #tpu.memory_space<vmem>>, %arg2: memref<1x8x64xf32, #tpu.memory_space<vmem>>, %arg3: memref<1x8x8x8xf32, #tpu.memory_space<vmem>>, %arg4: memref<8x8x64xf32, #tpu.memory_space<vmem>>, %arg5: memref<1x64xf32, #tpu.memory_space<vmem>>, %arg6: memref<1x8x64xf32, #tpu.memory_space<vmem>>) attributes {dimension_semantics = [#tpu.dimension_semantics<parallel>], iteration_bounds = array<i64: 2>, scalar_prefetch = 0 : i64, scratch_operands = 0 : i64, tpu.core_type = #tpu.core_type<tc>, window_params = [{pipeline_mode = #tpu.pipeline_mode<synchronous>, transform_indices = @transform_0, window_bounds = array<i64: 64, 64>}, {transform_indices = @transform_1, window_bounds = array<i64: 1, 8, 64>}, {transform_indices = @transform_2, window_bounds = array<i64: 1, 8, 8, 8>}, {pipeline_mode = #tpu.pipeline_mode<synchronous>, transform_indices = @transform_3, window_bounds = array<i64: 8, 8, 64>}, {pipeline_mode = #tpu.pipeline_mode<synchronous>, transform_indices = @transform_4, window_bounds = array<i64: 1, 64>}, {transform_indices = @transform_5, window_bounds = array<i64: 1, 8, 64>}]} {
    %c0 = arith.constant 0 : index
    %c0_0 = arith.constant 0 : index
    %c0_1 = arith.constant 0 : index
    %0 = vector.load %arg2[%c0, %c0_0, %c0_1] : memref<1x8x64xf32, #tpu.memory_space<vmem>>, vector<1x8x64xf32>
    %1 = vector.shape_cast %0 : vector<1x8x64xf32> to vector<8x64xf32>
    %c0_2 = arith.constant 0 : index
    %c0_3 = arith.constant 0 : index
    %c0_4 = arith.constant 0 : index
    %c0_5 = arith.constant 0 : index
    %2 = vector.load %arg3[%c0_2, %c0_3, %c0_4, %c0_5] : memref<1x8x8x8xf32, #tpu.memory_space<vmem>>, vector<1x8x8x8xf32>
    %3 = vector.shape_cast %2 : vector<1x8x8x8xf32> to vector<8x8x8xf32>
    %c0_6 = arith.constant 0 : index
    %c0_7 = arith.constant 0 : index
    %4 = vector.load %arg1[%c0_6, %c0_7] : memref<64x64xf32, #tpu.memory_space<vmem>>, vector<64x64xf32>
    %cst = arith.constant dense<0.000000e+00> : vector<64x8xf32>
    %5 = tpu.matmul %4, %1, %cst {dimension_numbers = #tpu.dot_dimension_numbers<[1], [1], [0], [0], [0, 0, 1, 0], [], []>} : vector<64x64xf32>, vector<8x64xf32>, vector<64x8xf32> -> vector<64x8xf32>
    %cst_8 = arith.constant dense<0xFF800000> : vector<64xf32>
    %6 = vector.multi_reduction <maximumf>, %5, %cst_8 [1] : vector<64x8xf32> to vector<64xf32>
    %7 = vector.shape_cast %6 : vector<64xf32> to vector<64x1xf32>
    %cst_9 = arith.constant 0.000000e+00 : f32
    %8 = vector.broadcast %cst_9 : f32 to vector<64x1xf32>
    %9 = arith.maximumf %7, %8 : vector<64x1xf32>
    %10 = vector.broadcast %9 : vector<64x1xf32> to vector<64x8xf32>
    %11 = arith.subf %5, %10 : vector<64x8xf32>
    %12 = math.exp %11 : vector<64x8xf32>
    %cst_10 = arith.constant dense<0.000000e+00> : vector<64xf32>
    %13 = vector.multi_reduction <add>, %12, %cst_10 [1] : vector<64x8xf32> to vector<64xf32>
    %14 = vector.shape_cast %13 : vector<64xf32> to vector<64x1xf32>
    %cst_11 = arith.constant 0.000000e+00 : f32
    %15 = vector.broadcast %cst_11 : f32 to vector<64x1xf32>
    %16 = arith.subf %15, %9 : vector<64x1xf32>
    %17 = math.exp %16 : vector<64x1xf32>
    %18 = arith.addf %14, %17 : vector<64x1xf32>
    %19 = tpu.reciprocal %18 : vector<64x1xf32> -> vector<64x1xf32>
    %20 = vector.broadcast %19 : vector<64x1xf32> to vector<64x8xf32>
    %21 = arith.mulf %12, %20 : vector<64x8xf32>
    %22 = vector.shape_cast %21 : vector<64x8xf32> to vector<8x8x8xf32>
    "tpu.trace_start"() <{level = 10 : i32, message = "hln,hnd->hld"}> : () -> ()
    %cst_12 = arith.constant dense<0.000000e+00> : vector<8x8x8xf32>
    %23 = tpu.matmul %22, %3, %cst_12 {dimension_numbers = #tpu.dot_dimension_numbers<[2], [1], [1], [2], [0, 0, 0, 1, 1, 2], [0], [0]>} : vector<8x8x8xf32>, vector<8x8x8xf32>, vector<8x8x8xf32> -> vector<8x8x8xf32>
    "tpu.trace_stop"() : () -> ()
    %c0_13 = arith.constant 0 : index
    %c0_14 = arith.constant 0 : index
    %c0_15 = arith.constant 0 : index
    %24 = vector.load %arg4[%c0_13, %c0_14, %c0_15] : memref<8x8x64xf32, #tpu.memory_space<vmem>>, vector<8x8x64xf32>
    "tpu.trace_start"() <{level = 10 : i32, message = "hld,hdj->hlj"}> : () -> ()
    %cst_16 = arith.constant dense<0.000000e+00> : vector<8x8x64xf32>
    %25 = tpu.matmul %23, %24, %cst_16 {dimension_numbers = #tpu.dot_dimension_numbers<[2], [1], [1], [2], [0, 0, 0, 1, 1, 2], [0], [0]>} : vector<8x8x8xf32>, vector<8x8x64xf32>, vector<8x8x64xf32> -> vector<8x8x64xf32>
    "tpu.trace_stop"() : () -> ()
    %cst_17 = arith.constant dense<0.000000e+00> : vector<8x64xf32>
    %26 = vector.multi_reduction <add>, %25, %cst_17 [0] : vector<8x8x64xf32> to vector<8x64xf32>
    %c0_18 = arith.constant 0 : index
    %c0_19 = arith.constant 0 : index
    %27 = vector.load %arg5[%c0_18, %c0_19] : memref<1x64xf32, #tpu.memory_space<vmem>>, vector<1x64xf32>
    %28 = vector.broadcast %27 : vector<1x64xf32> to vector<8x64xf32>
    %29 = arith.addf %26, %28 : vector<8x64xf32>
    %c0_20 = arith.constant 0 : index
    %c0_21 = arith.constant 0 : index
    %c0_22 = arith.constant 0 : index
    %30 = vector.load %arg6[%c0_20, %c0_21, %c0_22] : memref<1x8x64xf32, #tpu.memory_space<vmem>>, vector<1x8x64xf32>
    %31 = vector.shape_cast %30 : vector<1x8x64xf32> to vector<8x64xf32>
    %32 = vector.shape_cast %29 : vector<8x64xf32> to vector<1x8x64xf32>
    tpu.vector_store %arg6[%c0_20, %c0_21, %c0_22], %32 {strides = array<i32>} : memref<1x8x64xf32, #tpu.memory_space<vmem>>, vector<1x8x64xf32>,
    return
  }
  func.func @transform_0(%arg0: i32) -> (i32, i32) {
    %c0_i32 = arith.constant 0 : i32
    %c0_i32_0 = arith.constant 0 : i32
    %c0_i32_1 = arith.constant 0 : i32
    return %c0_i32, %c0_i32_0 : i32, i32
  }
  func.func @transform_1(%arg0: i32) -> (i32, i32, i32) {
    %c0_i32 = arith.constant 0 : i32
    %c0_i32_0 = arith.constant 0 : i32
    %c0_i32_1 = arith.constant 0 : i32
    return %arg0, %c0_i32, %c0_i32_0 : i32, i32, i32
  }
  func.func @transform_2(%arg0: i32) -> (i32, i32, i32, i32) {
    %c0_i32 = arith.constant 0 : i32
    %c0_i32_0 = arith.constant 0 : i32
    %c0_i32_1 = arith.constant 0 : i32
    %c0_i32_2 = arith.constant 0 : i32
    return %arg0, %c0_i32, %c0_i32_0, %c0_i32_1 : i32, i32, i32, i32
  }
  func.func @transform_3(%arg0: i32) -> (i32, i32, i32) {
    %c0_i32 = arith.constant 0 : i32
    %c0_i32_0 = arith.constant 0 : i32
    %c0_i32_1 = arith.constant 0 : i32
    %c0_i32_2 = arith.constant 0 : i32
    return %c0_i32, %c0_i32_0, %c0_i32_1 : i32, i32, i32
  }
  func.func @transform_4(%arg0: i32) -> (i32, i32) {
    %c0_i32 = arith.constant 0 : i32
    %c0_i32_0 = arith.constant 0 : i32
    %c0_i32_1 = arith.constant 0 : i32
    return %c0_i32, %c0_i32_0 : i32, i32
  }
  func.func @transform_5(%arg0: i32) -> (i32, i32, i32) {
    %c0_i32 = arith.constant 0 : i32
    %c0_i32_0 = arith.constant 0 : i32
    %c0_i32_1 = arith.constant 0 : i32
    return %arg0, %c0_i32, %c0_i32_0 : i32, i32, i32
  }
}

</mosaic_0001>

<llo_original>
// kernel: tpu_custom_call.1
$region0: #{tpu_custom_call.1}
  #allocation0 [shape = 'u32[]', space=smem, size = 0x4, offset = 0x4, fixed_abs, tag = 'smem constant byte address 0x4 - core index']
  #allocation1 [shape = 'u32[72,128]{1,0:T(1,128)}', space=vmem, size = 0x9000, scoped, tag = 'internal scratch']
  %s0 = inlined_call_operand.hbm [shape: f32[64,64], index: 0, kind: input, shape index: {}]
  %s1 = inlined_call_operand.hbm [shape: f32[2,8,64], index: 1, kind: input, shape index: {}]
  %s2 = inlined_call_operand.hbm [shape: f32[2,8,8,8], index: 2, kind: input, shape index: {}]
  %s3 = inlined_call_operand.hbm [shape: f32[8,8,64], index: 3, kind: input, shape index: {}]
  %s4 = inlined_call_operand.vmem [shape: f32[1,64], index: 4, kind: input, shape index: {}]
  %s5 = inlined_call_operand.hbm [shape: f32[2,8,64], index: 5, kind: output, shape index: {}]
  %s6 = sld [smem:[#allocation0]]
  $region69: #{tpu_custom_call.1} parent=0
    _
  %s8 = ssub.s32 1, %s6
  %s9 = scalar_select 0, %s8, %s6
  $region1: #{tpu_custom_call.1} parent=0
    #allocation2 [shape = 'u8[32768]{0}', space=vmem, size = 0x8000, scoped, tag = 'input window, operand 0, single buffered']
    #allocation3 [shape = 's32[2]{0}', space=sflag, size = 0x8, scoped, tag = 'scoped memory for tpu_custom_call.1']
    #allocation4 [shape = 's32[2]{0}', space=sflag, size = 0x8, scoped, tag = 'scoped memory for tpu_custom_call.1']
    #allocation5 [shape = 'u8[8192]{0}', space=vmem, size = 0x2000, scoped, tag = 'input window, operand 1']
    #allocation6 [shape = 's32[2]{0}', space=sflag, size = 0x8, scoped, tag = 'scoped memory for tpu_custom_call.1']
    #allocation7 [shape = 'u8[65536]{0}', space=vmem, size = 0x10000, scoped, tag = 'input window, operand 2']
    #allocation8 [shape = 'u8[32768]{0}', space=vmem, size = 0x8000, scoped, tag = 'input window, operand 3, single buffered']
    #allocation9 [shape = 's32[1]{0}', space=sflag, size = 0x4, scoped, tag = 'scoped memory for tpu_custom_call.1']
    #allocation10 [shape = 'u8[8192]{0}', space=vmem, size = 0x2000, scoped, tag = 'output window, operand 0']
    %10 = vsyncpa [#allocation3], 0
    %11 = vsyncpa [#allocation6], 0
    %s12 = scalar_lea.sflag [#allocation6], 1
    %13 = vsyncpa %s12, 0
    %14 = vsyncpa [#allocation9], 0
    %15 = vsyncpa [#allocation4], 0
    %s16 = scalar_lea.sflag [#allocation4], 1
    %17 = vsyncpa %s16, 0
    loop: start=0, step=1, limit=4
    $region2: #{tpu_custom_call.1} parent=1 // loop_pre_header
      _
    $region3: #{tpu_custom_call.1} parent=1 // loop_header
      %s19 = sphi 0, %s23
      %p20 = scmp.ge.s32.totalorder %s19, 4
      %s27 = sphi 0, %s27
      %s29 = sphi 0, %s27
      %s30 = sphi 0, %s29
      %s44 = sphi 0, %s30
      %s50 = sphi 0, %s52
      %s53 = sphi 0, %s50
      %s54 = sphi 0, %s53
      %s70 = sphi 0, %s54
      %s76 = sphi 0, %s78
      %s79 = sphi 0, %s76
      %s80 = sphi 0, %s79
      %s96 = sphi 0, %s80
      %s100 = sphi 0, %s100
      %s102 = sphi 0, %s100
      %s103 = sphi 0, %s102
      %s117 = sphi 0, %s103
      %s121 = sphi 0, %s121
      %s123 = sphi 0, %s121
      %s124 = sphi 0, %s123
      %s138 = sphi 0, %s124
      %s144 = sphi 0, %s146
      %s147 = sphi 0, %s144
      %s148 = sphi 0, %s147
      %s164 = sphi 0, %s148
    $region4: #{tpu_custom_call.1} parent=1 // loop_header_branch
      %22 = sbr.rel (%p20) target = $region8
    $region5: #{tpu_custom_call.1} parent=1 // loop_body
      %s24 = ssub.s32 %s19, 1
      %s25 = ssub.s32 %s19, 2
      %s26 = sadd.s32 %s19, 1
      %s28 = sadd.s32 %s27, 1
      %p31 = scmp.eq.s32.totalorder %s19, 1
      %p32 = scmp.ne.s32.totalorder %s27, %s29
      %p33 = scmp.eq.s32.totalorder %s19, 0
      %p34 = por %p32, %p33
      %p35 = scmp.ne.s32.totalorder %s27, %s29
      %p36 = scmp.eq.s32.totalorder %s24, 1
      %p37 = por %p35, %p36
      %p38 = scmp.ne.s32.totalorder %s29, %s30
      %p39 = scmp.eq.s32.totalorder %s24, 0
      %p40 = por %p38, %p39
      %p41 = scmp.ne.s32.totalorder %s29, %s30
      %p42 = scmp.eq.s32.totalorder %s25, 1
      %p43 = por %p41, %p42
      %p45 = scmp.ne.s32.totalorder %s30, %s44
      %p46 = scmp.eq.s32.totalorder %s25, 0
      %p47 = por %p45, %p46
      %s48 = ssub.s32 %s19, %s26
      %p49 = scmp.eq.s32.totalorder %s48, 0
      %s51 = sadd.s32 %s50, 1
      %s52 = scalar_select %p49, %s50, %s51
      %p55 = pneg %p49
      %p56 = scmp.eq.s32.totalorder %s19, 1
      %p57 = por %p55, %p56
      %p58 = scmp.ne.s32.totalorder %s50, %s53
      %p59 = scmp.eq.s32.totalorder %s19, 0
      %p60 = por %p58, %p59
      %p61 = scmp.ne.s32.totalorder %s50, %s53
      %p62 = scmp.eq.s32.totalorder %s24, 1
      %p63 = por %p61, %p62
      %p64 = scmp.ne.s32.totalorder %s53, %s54
      %p65 = scmp.eq.s32.totalorder %s24, 0
      %p66 = por %p64, %p65
      %p67 = scmp.ne.s32.totalorder %s53, %s54
      %p68 = scmp.eq.s32.totalorder %s25, 1
      %p69 = por %p67, %p68
      %p71 = scmp.ne.s32.totalorder %s54, %s70
      %p72 = scmp.eq.s32.totalorder %s25, 0
      %p73 = por %p71, %p72
      %s74 = ssub.s32 %s19, %s26
      %p75 = scmp.eq.s32.totalorder %s74, 0
      %s77 = sadd.s32 %s76, 1
      %s78 = scalar_select %p75, %s76, %s77
      %p81 = pneg %p75
      %p82 = scmp.eq.s32.totalorder %s19, 1
      %p83 = por %p81, %p82
      %p84 = scmp.ne.s32.totalorder %s76, %s79
      %p85 = scmp.eq.s32.totalorder %s19, 0
      %p86 = por %p84, %p85
      %p87 = scmp.ne.s32.totalorder %s76, %s79
      %p88 = scmp.eq.s32.totalorder %s24, 1
      %p89 = por %p87, %p88
      %p90 = scmp.ne.s32.totalorder %s79, %s80
      %p91 = scmp.eq.s32.totalorder %s24, 0
      %p92 = por %p90, %p91
      %p93 = scmp.ne.s32.totalorder %s79, %s80
      %p94 = scmp.eq.s32.totalorder %s25, 1
      %p95 = por %p93, %p94
      %p97 = scmp.ne.s32.totalorder %s80, %s96
      %p98 = scmp.eq.s32.totalorder %s25, 0
      %p99 = por %p97, %p98
      %s101 = sadd.s32 %s100, 1
      %p104 = scmp.eq.s32.totalorder %s19, 1
      %p105 = scmp.ne.s32.totalorder %s100, %s102
      %p106 = scmp.eq.s32.totalorder %s19, 0
      %p107 = por %p105, %p106
      %p108 = scmp.ne.s32.totalorder %s100, %s102
      %p109 = scmp.eq.s32.totalorder %s24, 1
      %p110 = por %p108, %p109
      %p111 = scmp.ne.s32.totalorder %s102, %s103
      %p112 = scmp.eq.s32.totalorder %s24, 0
      %p113 = por %p111, %p112
      %p114 = scmp.ne.s32.totalorder %s102, %s103
      %p115 = scmp.eq.s32.totalorder %s25, 1
      %p116 = por %p114, %p115
      %p118 = scmp.ne.s32.totalorder %s103, %s117
      %p119 = scmp.eq.s32.totalorder %s25, 0
      %p120 = por %p118, %p119
      %s122 = sadd.s32 %s121, 1
      %p125 = scmp.eq.s32.totalorder %s19, 1
      %p126 = scmp.ne.s32.totalorder %s121, %s123
      %p127 = scmp.eq.s32.totalorder %s19, 0
      %p128 = por %p126, %p127
      %p129 = scmp.ne.s32.totalorder %s121, %s123
      %p130 = scmp.eq.s32.totalorder %s24, 1
      %p131 = por %p129, %p130
      %p132 = scmp.ne.s32.totalorder %s123, %s124
      %p133 = scmp.eq.s32.totalorder %s24, 0
      %p134 = por %p132, %p133
      %p135 = scmp.ne.s32.totalorder %s123, %s124
      %p136 = scmp.eq.s32.totalorder %s25, 1
      %p137 = por %p135, %p136
      %p139 = scmp.ne.s32.totalorder %s124, %s138
      %p140 = scmp.eq.s32.totalorder %s25, 0
      %p141 = por %p139, %p140
      %s142 = ssub.s32 %s19, %s26
      %p143 = scmp.eq.s32.totalorder %s142, 0
      %s145 = sadd.s32 %s144, 1
      %s146 = scalar_select %p143, %s144, %s145
      %p149 = pneg %p143
      %p150 = scmp.eq.s32.totalorder %s19, 1
      %p151 = por %p149, %p150
      %p152 = scmp.ne.s32.totalorder %s144, %s147
      %p153 = scmp.eq.s32.totalorder %s19, 0
      %p154 = por %p152, %p153
      %p155 = scmp.ne.s32.totalorder %s144, %s147
      %p156 = scmp.eq.s32.totalorder %s24, 1
      %p157 = por %p155, %p156
      %p158 = scmp.ne.s32.totalorder %s147, %s148
      %p159 = scmp.eq.s32.totalorder %s24, 0
      %p160 = por %p158, %p159
      %p161 = scmp.ne.s32.totalorder %s147, %s148
      %p162 = scmp.eq.s32.totalorder %s25, 1
      %p163 = por %p161, %p162
      %p165 = scmp.ne.s32.totalorder %s148, %s164
      %p166 = scmp.eq.s32.totalorder %s25, 0
      %p167 = por %p165, %p166
      %p168 = scmp.le.s32.totalorder 1, %s19
      %p169 = scmp.lt.s32.totalorder %s19, 3
      %p170 = pnand %p168, %p169
      %p171 = pneg %p170
      // Predicated region
      $region9: #{tpu_custom_call.1} parent=5 // pred_check
        _
      $region10: #{tpu_custom_call.1} parent=5 // pred_check_branch
        %173 = sbr.rel (%p170) target = $region12
      $region11: #{tpu_custom_call.1} parent=5 // pred_region
        %s174 = ssub.s32 %s19, 1
        // Predicated region
        $region13: #{tpu_custom_call.1} parent=11 // pred_check
          %p175 = pneg %p40
        $region14: #{tpu_custom_call.1} parent=11 // pred_check_branch
          %177 = sbr.rel (%p175) target = $region16
        $region15: #{tpu_custom_call.1} parent=11 // pred_region
          %179 = vsyncadd [#allocation3], 0
          %s180 = sshll.u32 %s0, 4
          %s181 = int_to_ptr.hbm [resolvable:$true] %s180
          %s182 = sshll.u32 [#allocation2], 4
          %s183 = int_to_ptr.vmem [resolvable:$true] %s182
          %188 = dma.hbm_to_vmem [thread:$0]  %s181, 1024, %s183, [#allocation3], 128, 128, 8
        $region16: #{tpu_custom_call.1} parent=11 // pred_fallthru
          _
        // Predicated region
        $region17: #{tpu_custom_call.1} parent=11 // pred_check
          %p189 = pneg %p113
        $region18: #{tpu_custom_call.1} parent=11 // pred_check_branch
          %191 = sbr.rel (%p189) target = $region20
        $region19: #{tpu_custom_call.1} parent=11 // pred_region
          %193 = vsyncadd [#allocation9], 0
          %s194 = sshll.u32 %s3, 4
          %s195 = int_to_ptr.hbm [resolvable:$true] %s194
          %s196 = sshll.u32 [#allocation8], 4
          %s197 = int_to_ptr.vmem [resolvable:$true] %s196
          %202 = dma.hbm_to_vmem [thread:$0]  %s195, 1024, %s197, [#allocation9], 128, 128, 8
        $region20: #{tpu_custom_call.1} parent=11 // pred_fallthru
          _
        // Predicated region
        $region21: #{tpu_custom_call.1} parent=11 // pred_check
          %p203 = pneg %p134
        $region22: #{tpu_custom_call.1} parent=11 // pred_check_branch
          %205 = sbr.rel (%p203) target = $region24
        $region23: #{tpu_custom_call.1} parent=11 // pred_region
          _
        $region24: #{tpu_custom_call.1} parent=11 // pred_fallthru
          _
      $region12: #{tpu_custom_call.1} parent=5 // pred_fallthru
        _
      %p206 = scmp.lt.s32.totalorder %s19, 2
      // Predicated region
      $region25: #{tpu_custom_call.1} parent=5 // pred_check
        %p207 = pneg %p206
      $region26: #{tpu_custom_call.1} parent=5 // pred_check_branch
        %209 = sbr.rel (%p207) target = $region28
      $region27: #{tpu_custom_call.1} parent=5 // pred_region
        // Predicated region
        $region29: #{tpu_custom_call.1} parent=27 // pred_check
          %p210 = pneg %p60
        $region30: #{tpu_custom_call.1} parent=27 // pred_check_branch
          %212 = sbr.rel (%p210) target = $region32
        $region31: #{tpu_custom_call.1} parent=27 // pred_region
          %s213 = sand.u32 %s19, 1
          %s214 = scalar_lea.sflag [#allocation6], %s213
          %s215 = sand.u32 %s50, 1
          %s216 = smul.addr %s215, 8
          %s217 = scalar_lea.vmem [#allocation5], %s216
          %219 = vsyncadd %s214, 0
          %s220 = smul.addr %s19, 8
          %s221 = scalar_lea.hbm %s1, %s220
          %s223 = sshll.u32 %s221, 4
          %s224 = int_to_ptr.hbm [resolvable:$true] %s223
          %s225 = sshll.u32 %s217, 4
          %s226 = int_to_ptr.vmem [resolvable:$true] %s225
          %228 = dma.hbm_to_vmem [thread:$0]  %s224, 128, %s226, %s214
        $region32: #{tpu_custom_call.1} parent=27 // pred_fallthru
          _
        // Predicated region
        $region33: #{tpu_custom_call.1} parent=27 // pred_check
          %p229 = pneg %p86
        $region34: #{tpu_custom_call.1} parent=27 // pred_check_branch
          %231 = sbr.rel (%p229) target = $region36
        $region35: #{tpu_custom_call.1} parent=27 // pred_region
          %s232 = sand.u32 %s19, 1
          %s233 = scalar_lea.sflag [#allocation6], %s232
          %s234 = sand.u32 %s76, 1
          %s235 = smul.addr %s234, 64
          %s236 = scalar_lea.vmem [#allocation7], %s235
          %238 = vsyncadd %s233, 0
          %s239 = smul.addr %s19, 8
          %s240 = smul.addr %s239, 8
          %s241 = scalar_lea.hbm %s2, %s240
          %s242 = sshll.u32 %s241, 4
          %s243 = int_to_ptr.hbm [resolvable:$true] %s242
          %s244 = sshll.u32 %s236, 4
          %s245 = int_to_ptr.vmem [resolvable:$true] %s244
          %250 = dma.hbm_to_vmem [thread:$0]  %s243, 1024, %s245, %s233, 128, 128, 8
        $region36: #{tpu_custom_call.1} parent=27 // pred_fallthru
          _
      $region28: #{tpu_custom_call.1} parent=5 // pred_fallthru
        _
      %p251 = scmp.le.s32.totalorder 1, %s19
      %p252 = scmp.lt.s32.totalorder %s19, 3
      %p253 = pnand %p251, %p252
      %p254 = pneg %p253
      // Predicated region
      $region37: #{tpu_custom_call.1} parent=5 // pred_check
        _
      $region38: #{tpu_custom_call.1} parent=5 // pred_check_branch
        %256 = sbr.rel (%p253) target = $region40
      $region39: #{tpu_custom_call.1} parent=5 // pred_region
        %s257 = ssub.s32 %s19, 1
        // Predicated region
        $region41: #{tpu_custom_call.1} parent=39 // pred_check
          %p258 = pneg %p40
        $region42: #{tpu_custom_call.1} parent=39 // pred_check_branch
          %260 = sbr.rel (%p258) target = $region44
        $region43: #{tpu_custom_call.1} parent=39 // pred_region
          %262 = dma.done [#allocation3], 1024
        $region44: #{tpu_custom_call.1} parent=39 // pred_fallthru
          _
        %s263 = sand.u32 %s24, 1
        %s264 = scalar_lea.sflag [#allocation6], %s263
        %s265 = sand.u32 %s53, 1
        %s266 = smul.addr %s265, 8
        %s267 = scalar_lea.vmem [#allocation5], %s266
        // Predicated region
        $region45: #{tpu_custom_call.1} parent=39 // pred_check
          %p268 = pneg %p66
        $region46: #{tpu_custom_call.1} parent=39 // pred_check_branch
          %270 = sbr.rel (%p268) target = $region48
        $region47: #{tpu_custom_call.1} parent=39 // pred_region
          %272 = dma.done %s264, 128
        $region48: #{tpu_custom_call.1} parent=39 // pred_fallthru
          _
        %s273 = sand.u32 %s24, 1
        %s274 = scalar_lea.sflag [#allocation6], %s273
        %s275 = sand.u32 %s79, 1
        %s276 = smul.addr %s275, 64
        %s277 = scalar_lea.vmem [#allocation7], %s276
        // Predicated region
        $region49: #{tpu_custom_call.1} parent=39 // pred_check
          %p278 = pneg %p92
        $region50: #{tpu_custom_call.1} parent=39 // pred_check_branch
          %280 = sbr.rel (%p278) target = $region52
        $region51: #{tpu_custom_call.1} parent=39 // pred_region
          %282 = dma.done %s274, 1024
        $region52: #{tpu_custom_call.1} parent=39 // pred_fallthru
          _
        // Predicated region
        $region53: #{tpu_custom_call.1} parent=39 // pred_check
          %p283 = pneg %p113
        $region54: #{tpu_custom_call.1} parent=39 // pred_check_branch
          %285 = sbr.rel (%p283) target = $region56
        $region55: #{tpu_custom_call.1} parent=39 // pred_region
          %287 = dma.done [#allocation9], 1024
        $region56: #{tpu_custom_call.1} parent=39 // pred_fallthru
          _
        %p288 = pneg %p40
        %p289 = pneg %p37
        %s290 = sand.u32 %s24, 1
        %s291 = scalar_lea.sflag [#allocation6], %s290
        %s292 = sand.u32 %s53, 1
        %s293 = smul.addr %s292, 8
        %s294 = scalar_lea.vmem [#allocation5], %s293
        %p295 = pneg %p66
        %p296 = pneg %p63
        %s297 = sand.u32 %s24, 1
        %s298 = scalar_lea.sflag [#allocation6], %s297
        %s299 = sand.u32 %s79, 1
        %s300 = smul.addr %s299, 64
        %s301 = scalar_lea.vmem [#allocation7], %s300
        %p302 = pneg %p92
        %p303 = pneg %p89
        %p304 = pneg %p113
        %p305 = pneg %p110
        %p306 = pneg %p134
        %p307 = pneg %p131
        %p308 = pneg %p160
        %p309 = pneg %p157
        %s310 = sand.u32 %s147, 1
        %s311 = scalar_lea.sflag [#allocation4], %s310
        %s312 = sand.u32 %s147, 1
        %s313 = smul.addr %s312, 8
        %s314 = scalar_lea.vmem [#allocation10], %s313
        %v315 = vld [vmem:[%s267] sm:$0xff]
        %v316 = vld [vmem:[%s277] sm:$0xff]
        %v317 = vld [vmem:[%s277 + $0x8] sm:$0xff]
        %v318 = vld [vmem:[%s277 + $0x10] sm:$0xff]
        %v319 = vld [vmem:[%s277 + $0x18] sm:$0xff]
        %v320 = vld [vmem:[%s277 + $0x20] sm:$0xff]
        %v321 = vld [vmem:[%s277 + $0x28] sm:$0xff]
        %v322 = vld [vmem:[%s277 + $0x30] sm:$0xff]
        %v323 = vld [vmem:[%s277 + $0x38] sm:$0xff]
        %v324 = vld [vmem:[#allocation2] sm:$0xff]
        %v325 = vld [vmem:[#allocation2 + $0x8] sm:$0xff]
        %v326 = vld [vmem:[#allocation2 + $0x10] sm:$0xff]
        %v327 = vld [vmem:[#allocation2 + $0x18] sm:$0xff]
        %v328 = vld [vmem:[#allocation2 + $0x20] sm:$0xff]
        %v329 = vld [vmem:[#allocation2 + $0x28] sm:$0xff]
        %v330 = vld [vmem:[#allocation2 + $0x30] sm:$0xff]
        %v331 = vld [vmem:[#allocation2 + $0x38] sm:$0xff]
        %vm332 = vcmask 523264
        %v334 = vsel %vm332, %v324, 0
        %v337 = vsel %vm332, %v325, 0
        %v340 = vsel %vm332, %v326, 0
        %v343 = vsel %vm332, %v327, 0
        %v346 = vsel %vm332, %v328, 0
        %v349 = vsel %vm332, %v329, 0
        %v352 = vsel %vm332, %v330, 0
        %v355 = vsel %vm332, %v331, 0
        %v358 = vsel %vm332, %v315, 0
        %360 = vmatpush.xpose.msra.mxu0 0.0
        %361 = vmatpush.xpose.msra.mxu0 0.0
        %362 = vmatpush.xpose.msra.mxu0 0.0
        %363 = vmatpush.xpose.msra.mxu0 0.0
        %364 = vmatpush.xpose.msra.mxu0 0.0
        %365 = vmatpush.xpose.msra.mxu0 0.0
        %366 = vmatpush.xpose.msra.mxu0 0.0
        %367 = vmatpush.xpose.msra.mxu0 0.0
        %368 = vmatpush.xpose.msra.mxu0 0.0
        %369 = vmatpush.xpose.msra.mxu0 0.0
        %370 = vmatpush.xpose.msra.mxu0 0.0
        %371 = vmatpush.xpose.msra.mxu0 0.0
        %372 = vmatpush.xpose.msra.mxu0 0.0
        %373 = vmatpush.xpose.msra.mxu0 0.0
        %374 = vmatpush.xpose.msra.mxu0 0.0
        %375 = vmatpush.xpose.msra.mxu0 %v358
        %376 = vmatmul.f32.gmra.mxu0 %v334
        %v377 = vpop.f32.mrf.mxu0
        %v378 = vadd.f32 0.0, %v377
        %379 = vmatmul.f32.gmra.mxu0 %v337
        %v380 = vpop.f32.mrf.mxu0
        %v381 = vadd.f32 0.0, %v380
        %382 = vmatmul.f32.gmra.mxu0 %v340
        %v383 = vpop.f32.mrf.mxu0
        %v384 = vadd.f32 0.0, %v383
        %385 = vmatmul.f32.gmra.mxu0 %v343
        %v386 = vpop.f32.mrf.mxu0
        %v387 = vadd.f32 0.0, %v386
        %388 = vmatmul.f32.gmra.mxu0 %v346
        %v389 = vpop.f32.mrf.mxu0
        %v390 = vadd.f32 0.0, %v389
        %391 = vmatmul.f32.gmra.mxu0 %v349
        %v392 = vpop.f32.mrf.mxu0
        %v393 = vadd.f32 0.0, %v392
        %394 = vmatmul.f32.gmra.mxu0 %v352
        %v395 = vpop.f32.mrf.mxu0
        %v396 = vadd.f32 0.0, %v395
        %397 = vmatmul.f32.gmra.mxu0 %v355
        %v398 = vpop.f32.mrf.mxu0
        %v399 = vadd.f32 0.0, %v398
        %400 = vdwg.mxu0
        %vm401 = vcmask 64512
        %v402 = vsel %vm401, %v378, -inf
        %403 = vmax.xlane.f32.xlu0 %v402
        %v404 = vpop.xlane.xlu0 %403
        %v405 = vsel %vm401, %v381, -inf
        %406 = vmax.xlane.f32.xlu0 %v405
        %v407 = vpop.xlane.xlu0 %406
        %v408 = vsel %vm401, %v384, -inf
        %409 = vmax.xlane.f32.xlu0 %v408
        %v410 = vpop.xlane.xlu0 %409
        %v411 = vsel %vm401, %v387, -inf
        %412 = vmax.xlane.f32.xlu0 %v411
        %v413 = vpop.xlane.xlu0 %412
        %v414 = vsel %vm401, %v390, -inf
        %415 = vmax.xlane.f32.xlu0 %v414
        %v416 = vpop.xlane.xlu0 %415
        %v417 = vsel %vm401, %v393, -inf
        %418 = vmax.xlane.f32.xlu0 %v417
        %v419 = vpop.xlane.xlu0 %418
        %v420 = vsel %vm401, %v396, -inf
        %421 = vmax.xlane.f32.xlu0 %v420
        %v422 = vpop.xlane.xlu0 %421
        %v423 = vsel %vm401, %v399, -inf
        %424 = vmax.xlane.f32.xlu0 %v423
        %v425 = vpop.xlane.xlu0 %424
        %v426 = vmax.f32 %v404, 0.0
        %v427 = vmax.f32 %v407, 0.0
        %v428 = vmax.f32 %v410, 0.0
        %v429 = vmax.f32 %v413, 0.0
        %v430 = vmax.f32 %v416, 0.0
        %v431 = vmax.f32 %v419, 0.0
        %v432 = vmax.f32 %v422, 0.0
        %v433 = vmax.f32 %v425, 0.0
        %v434 = vsub.f32 %v378, %v426
        %v435 = vsub.f32 %v381, %v427
        %v436 = vsub.f32 %v384, %v428
        %v437 = vsub.f32 %v387, %v429
        %v438 = vsub.f32 %v390, %v430
        %v439 = vsub.f32 %v393, %v431
        %v440 = vsub.f32 %v396, %v432
        %v441 = vsub.f32 %v399, %v433
        %v442 = vmul.f32 %v434, 1.442695
        %v443 = vpow.pop %v442
        %v444 = vmul.f32 %v435, 1.442695
        %v445 = vpow.pop %v444
        %v446 = vmul.f32 %v436, 1.442695
        %v447 = vpow.pop %v446
        %v448 = vmul.f32 %v437, 1.442695
        %v449 = vpow.pop %v448
        %v450 = vmul.f32 %v438, 1.442695
        %v451 = vpow.pop %v450
        %v452 = vmul.f32 %v439, 1.442695
        %v453 = vpow.pop %v452
        %v454 = vmul.f32 %v440, 1.442695
        %v455 = vpow.pop %v454
        %v456 = vmul.f32 %v441, 1.442695
        %v457 = vpow.pop %v456
        %v458 = vsel %vm401, %v443, 0.0
        %459 = vadd.xlane.f32.xlu0 %v458
        %v460 = vpop.xlane.xlu0 %459
        %v461 = vsel %vm401, %v445, 0.0
        %462 = vadd.xlane.f32.xlu0 %v461
        %v463 = vpop.xlane.xlu0 %462
        %v464 = vsel %vm401, %v447, 0.0
        %465 = vadd.xlane.f32.xlu0 %v464
        %v466 = vpop.xlane.xlu0 %465
        %v467 = vsel %vm401, %v449, 0.0
        %468 = vadd.xlane.f32.xlu0 %v467
        %v469 = vpop.xlane.xlu0 %468
        %v470 = vsel %vm401, %v451, 0.0
        %471 = vadd.xlane.f32.xlu0 %v470
        %v472 = vpop.xlane.xlu0 %471
        %v473 = vsel %vm401, %v453, 0.0
        %474 = vadd.xlane.f32.xlu0 %v473
        %v475 = vpop.xlane.xlu0 %474
        %v476 = vsel %vm401, %v455, 0.0
        %477 = vadd.xlane.f32.xlu0 %v476
        %v478 = vpop.xlane.xlu0 %477
        %v479 = vsel %vm401, %v457, 0.0
        %480 = vadd.xlane.f32.xlu0 %v479
        %v481 = vpop.xlane.xlu0 %480
        %v482 = vsub.f32 0.0, %v426
        %v483 = vsub.f32 0.0, %v427
        %v484 = vsub.f32 0.0, %v428
        %v485 = vsub.f32 0.0, %v429
        %v486 = vsub.f32 0.0, %v430
        %v487 = vsub.f32 0.0, %v431
        %v488 = vsub.f32 0.0, %v432
        %v489 = vsub.f32 0.0, %v433
        %v490 = vmul.f32 %v482, 1.442695
        %v491 = vpow.pop %v490
        %v492 = vmul.f32 %v483, 1.442695
        %v493 = vpow.pop %v492
        %v494 = vmul.f32 %v484, 1.442695
        %v495 = vpow.pop %v494
        %v496 = vmul.f32 %v485, 1.442695
        %v497 = vpow.pop %v496
        %v498 = vmul.f32 %v486, 1.442695
        %v499 = vpow.pop %v498
        %v500 = vmul.f32 %v487, 1.442695
        %v501 = vpow.pop %v500
        %v502 = vmul.f32 %v488, 1.442695
        %v503 = vpow.pop %v502
        %v504 = vmul.f32 %v489, 1.442695
        %v505 = vpow.pop %v504
        %v506 = vadd.f32 %v460, %v491
        %v507 = vadd.f32 %v463, %v493
        %v508 = vadd.f32 %v466, %v495
        %v509 = vadd.f32 %v469, %v497
        %v510 = vadd.f32 %v472, %v499
        %v511 = vadd.f32 %v475, %v501
        %v512 = vadd.f32 %v478, %v503
        %v513 = vadd.f32 %v481, %v505
        %v514 = vrcp.pop %v506
        %v515 = vmul.f32 %v506, %v514
        %v516 = vsub.f32 1.0, %v515
        %v517 = vmul.f32 %v514, %v516
        %v518 = vadd.f32 %v514, %v517
        %vm519 = vweird.f32 %v506
        %vm520 = vweird.f32 %v514
        %vm521 = vmor %vm519, %vm520
        %v522 = vsel %vm521, %v514, %v518
        %v523 = vand.u32 2147483647, %v506
        %vm524 = vcmp.eq.f32.partialorder %v523, 8.507059e+37
        %v525 = vand.u32 %v506, 2147483648
        %v526 = vor.u32 1.1754944e-38, %v525
        %v527 = vsel %vm524, %v526, %v522
        %v528 = vrcp.pop %v507
        %v529 = vmul.f32 %v507, %v528
        %v530 = vsub.f32 1.0, %v529
        %v531 = vmul.f32 %v528, %v530
        %v532 = vadd.f32 %v528, %v531
        %vm533 = vweird.f32 %v507
        %vm534 = vweird.f32 %v528
        %vm535 = vmor %vm533, %vm534
        %v536 = vsel %vm535, %v528, %v532
        %v537 = vand.u32 2147483647, %v507
        %vm538 = vcmp.eq.f32.partialorder %v537, 8.507059e+37
        %v539 = vand.u32 %v507, 2147483648
        %v540 = vor.u32 1.1754944e-38, %v539
        %v541 = vsel %vm538, %v540, %v536
        %v542 = vrcp.pop %v508
        %v543 = vmul.f32 %v508, %v542
        %v544 = vsub.f32 1.0, %v543
        %v545 = vmul.f32 %v542, %v544
        %v546 = vadd.f32 %v542, %v545
        %vm547 = vweird.f32 %v508
        %vm548 = vweird.f32 %v542
        %vm549 = vmor %vm547, %vm548
        %v550 = vsel %vm549, %v542, %v546
        %v551 = vand.u32 2147483647, %v508
        %vm552 = vcmp.eq.f32.partialorder %v551, 8.507059e+37
        %v553 = vand.u32 %v508, 2147483648
        %v554 = vor.u32 1.1754944e-38, %v553
        %v555 = vsel %vm552, %v554, %v550
        %v556 = vrcp.pop %v509
        %v557 = vmul.f32 %v509, %v556
        %v558 = vsub.f32 1.0, %v557
        %v559 = vmul.f32 %v556, %v558
        %v560 = vadd.f32 %v556, %v559
        %vm561 = vweird.f32 %v509
        %vm562 = vweird.f32 %v556
        %vm563 = vmor %vm561, %vm562
        %v564 = vsel %vm563, %v556, %v560
        %v565 = vand.u32 2147483647, %v509
        %vm566 = vcmp.eq.f32.partialorder %v565, 8.507059e+37
        %v567 = vand.u32 %v509, 2147483648
        %v568 = vor.u32 1.1754944e-38, %v567
        %v569 = vsel %vm566, %v568, %v564
        %v570 = vrcp.pop %v510
        %v571 = vmul.f32 %v510, %v570
        %v572 = vsub.f32 1.0, %v571
        %v573 = vmul.f32 %v570, %v572
        %v574 = vadd.f32 %v570, %v573
        %vm575 = vweird.f32 %v510
        %vm576 = vweird.f32 %v570
        %vm577 = vmor %vm575, %vm576
        %v578 = vsel %vm577, %v570, %v574
        %v579 = vand.u32 2147483647, %v510
        %vm580 = vcmp.eq.f32.partialorder %v579, 8.507059e+37
        %v581 = vand.u32 %v510, 2147483648
        %v582 = vor.u32 1.1754944e-38, %v581
        %v583 = vsel %vm580, %v582, %v578
        %v584 = vrcp.pop %v511
        %v585 = vmul.f32 %v511, %v584
        %v586 = vsub.f32 1.0, %v585
        %v587 = vmul.f32 %v584, %v586
        %v588 = vadd.f32 %v584, %v587
        %vm589 = vweird.f32 %v511
        %vm590 = vweird.f32 %v584
        %vm591 = vmor %vm589, %vm590
        %v592 = vsel %vm591, %v584, %v588
        %v593 = vand.u32 2147483647, %v511
        %vm594 = vcmp.eq.f32.partialorder %v593, 8.507059e+37
        %v595 = vand.u32 %v511, 2147483648
        %v596 = vor.u32 1.1754944e-38, %v595
        %v597 = vsel %vm594, %v596, %v592
        %v598 = vrcp.pop %v512
        %v599 = vmul.f32 %v512, %v598
        %v600 = vsub.f32 1.0, %v599
        %v601 = vmul.f32 %v598, %v600
        %v602 = vadd.f32 %v598, %v601
        %vm603 = vweird.f32 %v512
        %vm604 = vweird.f32 %v598
        %vm605 = vmor %vm603, %vm604
        %v606 = vsel %vm605, %v598, %v602
        %v607 = vand.u32 2147483647, %v512
        %vm608 = vcmp.eq.f32.partialorder %v607, 8.507059e+37
        %v609 = vand.u32 %v512, 2147483648
        %v610 = vor.u32 1.1754944e-38, %v609
        %v611 = vsel %vm608, %v610, %v606
        %v612 = vrcp.pop %v513
        %v613 = vmul.f32 %v513, %v612
        %v614 = vsub.f32 1.0, %v613
        %v615 = vmul.f32 %v612, %v614
        %v616 = vadd.f32 %v612, %v615
        %vm617 = vweird.f32 %v513
        %vm618 = vweird.f32 %v612
        %vm619 = vmor %vm617, %vm618
        %v620 = vsel %vm619, %v612, %v616
        %v621 = vand.u32 2147483647, %v513
        %vm622 = vcmp.eq.f32.partialorder %v621, 8.507059e+37
        %v623 = vand.u32 %v513, 2147483648
        %v624 = vor.u32 1.1754944e-38, %v623
        %v625 = vsel %vm622, %v624, %v620
        %v626 = vmul.f32 %v443, %v527
        %v627 = vmul.f32 %v445, %v541
        %v628 = vmul.f32 %v447, %v555
        %v629 = vmul.f32 %v449, %v569
        %v630 = vmul.f32 %v451, %v583
        %v631 = vmul.f32 %v453, %v597
        %v632 = vmul.f32 %v455, %v611
        %v633 = vmul.f32 %v457, %v625
        %v635 = vsel %vm401, %v626, 0
        %637 = vmatpush.msra.mxu0 0.0
        %638 = vmatpush.msra.mxu0 0.0
        %639 = vmatpush.msra.mxu0 0.0
        %640 = vmatpush.msra.mxu0 0.0
        %641 = vmatpush.msra.mxu0 0.0
        %642 = vmatpush.msra.mxu0 0.0
        %643 = vmatpush.msra.mxu0 0.0
        %644 = vmatpush.msra.mxu0 0.0
        %645 = vmatpush.msra.mxu0 0.0
        %646 = vmatpush.msra.mxu0 0.0
        %647 = vmatpush.msra.mxu0 0.0
        %648 = vmatpush.msra.mxu0 0.0
        %649 = vmatpush.msra.mxu0 0.0
        %650 = vmatpush.msra.mxu0 0.0
        %651 = vmatpush.msra.mxu0 0.0
        %652 = vmatpush.msra.mxu0 %v316
        %653 = vmatmul.f32.gmra.mxu0 %v635
        %v654 = vpop.f32.mrf.mxu0
        %v655 = vadd.f32 0.0, %v654
        %656 = vdwg.mxu0
        %v658 = vsel %vm401, %v627, 0
        %660 = vmatpush.msra.mxu0 0.0
        %661 = vmatpush.msra.mxu0 0.0
        %662 = vmatpush.msra.mxu0 0.0
        %663 = vmatpush.msra.mxu0 0.0
        %664 = vmatpush.msra.mxu0 0.0
        %665 = vmatpush.msra.mxu0 0.0
        %666 = vmatpush.msra.mxu0 0.0
        %667 = vmatpush.msra.mxu0 0.0
        %668 = vmatpush.msra.mxu0 0.0
        %669 = vmatpush.msra.mxu0 0.0
        %670 = vmatpush.msra.mxu0 0.0
        %671 = vmatpush.msra.mxu0 0.0
        %672 = vmatpush.msra.mxu0 0.0
        %673 = vmatpush.msra.mxu0 0.0
        %674 = vmatpush.msra.mxu0 0.0
        %675 = vmatpush.msra.mxu0 %v317
        %676 = vmatmul.f32.gmra.mxu0 %v658
        %v677 = vpop.f32.mrf.mxu0
        %v678 = vadd.f32 0.0, %v677
        %679 = vdwg.mxu0
        %v681 = vsel %vm401, %v628, 0
        %683 = vmatpush.msra.mxu0 0.0
        %684 = vmatpush.msra.mxu0 0.0
        %685 = vmatpush.msra.mxu0 0.0
        %686 = vmatpush.msra.mxu0 0.0
        %687 = vmatpush.msra.mxu0 0.0
        %688 = vmatpush.msra.mxu0 0.0
        %689 = vmatpush.msra.mxu0 0.0
        %690 = vmatpush.msra.mxu0 0.0
        %691 = vmatpush.msra.mxu0 0.0
        %692 = vmatpush.msra.mxu0 0.0
        %693 = vmatpush.msra.mxu0 0.0
        %694 = vmatpush.msra.mxu0 0.0
        %695 = vmatpush.msra.mxu0 0.0
        %696 = vmatpush.msra.mxu0 0.0
        %697 = vmatpush.msra.mxu0 0.0
        %698 = vmatpush.msra.mxu0 %v318
        %699 = vmatmul.f32.gmra.mxu0 %v681
        %v700 = vpop.f32.mrf.mxu0
        %v701 = vadd.f32 0.0, %v700
        %702 = vdwg.mxu0
        %v704 = vsel %vm401, %v629, 0
        %706 = vmatpush.msra.mxu0 0.0
        %707 = vmatpush.msra.mxu0 0.0
        %708 = vmatpush.msra.mxu0 0.0
        %709 = vmatpush.msra.mxu0 0.0
        %710 = vmatpush.msra.mxu0 0.0
        %711 = vmatpush.msra.mxu0 0.0
        %712 = vmatpush.msra.mxu0 0.0
        %713 = vmatpush.msra.mxu0 0.0
        %714 = vmatpush.msra.mxu0 0.0
        %715 = vmatpush.msra.mxu0 0.0
        %716 = vmatpush.msra.mxu0 0.0
        %717 = vmatpush.msra.mxu0 0.0
        %718 = vmatpush.msra.mxu0 0.0
        %719 = vmatpush.msra.mxu0 0.0
        %720 = vmatpush.msra.mxu0 0.0
        %721 = vmatpush.msra.mxu0 %v319
        %722 = vmatmul.f32.gmra.mxu0 %v704
        %v723 = vpop.f32.mrf.mxu0
        %v724 = vadd.f32 0.0, %v723
        %725 = vdwg.mxu0
        %v727 = vsel %vm401, %v630, 0
        %729 = vmatpush.msra.mxu0 0.0
        %730 = vmatpush.msra.mxu0 0.0
        %731 = vmatpush.msra.mxu0 0.0
        %732 = vmatpush.msra.mxu0 0.0
        %733 = vmatpush.msra.mxu0 0.0
        %734 = vmatpush.msra.mxu0 0.0
        %735 = vmatpush.msra.mxu0 0.0
        %736 = vmatpush.msra.mxu0 0.0
        %737 = vmatpush.msra.mxu0 0.0
        %738 = vmatpush.msra.mxu0 0.0
        %739 = vmatpush.msra.mxu0 0.0
        %740 = vmatpush.msra.mxu0 0.0
        %741 = vmatpush.msra.mxu0 0.0
        %742 = vmatpush.msra.mxu0 0.0
        %743 = vmatpush.msra.mxu0 0.0
        %744 = vmatpush.msra.mxu0 %v320
        %745 = vmatmul.f32.gmra.mxu0 %v727
        %v746 = vpop.f32.mrf.mxu0
        %v747 = vadd.f32 0.0, %v746
        %748 = vdwg.mxu0
        %v750 = vsel %vm401, %v631, 0
        %752 = vmatpush.msra.mxu0 0.0
        %753 = vmatpush.msra.mxu0 0.0
        %754 = vmatpush.msra.mxu0 0.0
        %755 = vmatpush.msra.mxu0 0.0
        %756 = vmatpush.msra.mxu0 0.0
        %757 = vmatpush.msra.mxu0 0.0
        %758 = vmatpush.msra.mxu0 0.0
        %759 = vmatpush.msra.mxu0 0.0
        %760 = vmatpush.msra.mxu0 0.0
        %761 = vmatpush.msra.mxu0 0.0
        %762 = vmatpush.msra.mxu0 0.0
        %763 = vmatpush.msra.mxu0 0.0
        %764 = vmatpush.msra.mxu0 0.0
        %765 = vmatpush.msra.mxu0 0.0
        %766 = vmatpush.msra.mxu0 0.0
        %767 = vmatpush.msra.mxu0 %v321
        %768 = vmatmul.f32.gmra.mxu0 %v750
        %v769 = vpop.f32.mrf.mxu0
        %v770 = vadd.f32 0.0, %v769
        %771 = vdwg.mxu0
        %v773 = vsel %vm401, %v632, 0
        %775 = vmatpush.msra.mxu0 0.0
        %776 = vmatpush.msra.mxu0 0.0
        %777 = vmatpush.msra.mxu0 0.0
        %778 = vmatpush.msra.mxu0 0.0
        %779 = vmatpush.msra.mxu0 0.0
        %780 = vmatpush.msra.mxu0 0.0
        %781 = vmatpush.msra.mxu0 0.0
        %782 = vmatpush.msra.mxu0 0.0
        %783 = vmatpush.msra.mxu0 0.0
        %784 = vmatpush.msra.mxu0 0.0
        %785 = vmatpush.msra.mxu0 0.0
        %786 = vmatpush.msra.mxu0 0.0
        %787 = vmatpush.msra.mxu0 0.0
        %788 = vmatpush.msra.mxu0 0.0
        %789 = vmatpush.msra.mxu0 0.0
        %790 = vmatpush.msra.mxu0 %v322
        %791 = vmatmul.f32.gmra.mxu0 %v773
        %v792 = vpop.f32.mrf.mxu0
        %v793 = vadd.f32 0.0, %v792
        %794 = vdwg.mxu0
        %v796 = vsel %vm401, %v633, 0
        %798 = vmatpush.msra.mxu0 0.0
        %799 = vmatpush.msra.mxu0 0.0
        %800 = vmatpush.msra.mxu0 0.0
        %801 = vmatpush.msra.mxu0 0.0
        %802 = vmatpush.msra.mxu0 0.0
        %803 = vmatpush.msra.mxu0 0.0
        %804 = vmatpush.msra.mxu0 0.0
        %805 = vmatpush.msra.mxu0 0.0
        %806 = vmatpush.msra.mxu0 0.0
        %807 = vmatpush.msra.mxu0 0.0
        %808 = vmatpush.msra.mxu0 0.0
        %809 = vmatpush.msra.mxu0 0.0
        %810 = vmatpush.msra.mxu0 0.0
        %811 = vmatpush.msra.mxu0 0.0
        %812 = vmatpush.msra.mxu0 0.0
        %813 = vmatpush.msra.mxu0 %v323
        %814 = vmatmul.f32.gmra.mxu0 %v796
        %v815 = vpop.f32.mrf.mxu0
        %v816 = vadd.f32 0.0, %v815
        %817 = vdwg.mxu0
        %v818 = vld [vmem:[#allocation8] sm:$0xff]
        %v819 = vld [vmem:[#allocation8 + $0x8] sm:$0xff]
        %v820 = vld [vmem:[#allocation8 + $0x10] sm:$0xff]
        %v821 = vld [vmem:[#allocation8 + $0x18] sm:$0xff]
        %v822 = vld [vmem:[#allocation8 + $0x20] sm:$0xff]
        %v823 = vld [vmem:[#allocation8 + $0x28] sm:$0xff]
        %v824 = vld [vmem:[#allocation8 + $0x30] sm:$0xff]
        %v825 = vld [vmem:[#allocation8 + $0x38] sm:$0xff]
        %v827 = vsel %vm401, %v655, 0
        %829 = vmatpush.msra.mxu0 0.0
        %830 = vmatpush.msra.mxu0 0.0
        %831 = vmatpush.msra.mxu0 0.0
        %832 = vmatpush.msra.mxu0 0.0
        %833 = vmatpush.msra.mxu0 0.0
        %834 = vmatpush.msra.mxu0 0.0
        %835 = vmatpush.msra.mxu0 0.0
        %836 = vmatpush.msra.mxu0 0.0
        %837 = vmatpush.msra.mxu0 0.0
        %838 = vmatpush.msra.mxu0 0.0
        %839 = vmatpush.msra.mxu0 0.0
        %840 = vmatpush.msra.mxu0 0.0
        %841 = vmatpush.msra.mxu0 0.0
        %842 = vmatpush.msra.mxu0 0.0
        %843 = vmatpush.msra.mxu0 0.0
        %844 = vmatpush.msra.mxu0 %v818
        %845 = vmatmul.f32.gmra.mxu0 %v827
        %v846 = vpop.f32.mrf.mxu0
        %v847 = vadd.f32 0.0, %v846
        %848 = vdwg.mxu0
        %v850 = vsel %vm401, %v678, 0
        %852 = vmatpush.msra.mxu0 0.0
        %853 = vmatpush.msra.mxu0 0.0
        %854 = vmatpush.msra.mxu0 0.0
        %855 = vmatpush.msra.mxu0 0.0
        %856 = vmatpush.msra.mxu0 0.0
        %857 = vmatpush.msra.mxu0 0.0
        %858 = vmatpush.msra.mxu0 0.0
        %859 = vmatpush.msra.mxu0 0.0
        %860 = vmatpush.msra.mxu0 0.0
        %861 = vmatpush.msra.mxu0 0.0
        %862 = vmatpush.msra.mxu0 0.0
        %863 = vmatpush.msra.mxu0 0.0
        %864 = vmatpush.msra.mxu0 0.0
        %865 = vmatpush.msra.mxu0 0.0
        %866 = vmatpush.msra.mxu0 0.0
        %867 = vmatpush.msra.mxu0 %v819
        %868 = vmatmul.f32.gmra.mxu0 %v850
        %v869 = vpop.f32.mrf.mxu0
        %v870 = vadd.f32 0.0, %v869
        %871 = vdwg.mxu0
        %v873 = vsel %vm401, %v701, 0
        %875 = vmatpush.msra.mxu0 0.0
        %876 = vmatpush.msra.mxu0 0.0
        %877 = vmatpush.msra.mxu0 0.0
        %878 = vmatpush.msra.mxu0 0.0
        %879 = vmatpush.msra.mxu0 0.0
        %880 = vmatpush.msra.mxu0 0.0
        %881 = vmatpush.msra.mxu0 0.0
        %882 = vmatpush.msra.mxu0 0.0
        %883 = vmatpush.msra.mxu0 0.0
        %884 = vmatpush.msra.mxu0 0.0
        %885 = vmatpush.msra.mxu0 0.0
        %886 = vmatpush.msra.mxu0 0.0
        %887 = vmatpush.msra.mxu0 0.0
        %888 = vmatpush.msra.mxu0 0.0
        %889 = vmatpush.msra.mxu0 0.0
        %890 = vmatpush.msra.mxu0 %v820
        %891 = vmatmul.f32.gmra.mxu0 %v873
        %v892 = vpop.f32.mrf.mxu0
        %v893 = vadd.f32 0.0, %v892
        %894 = vdwg.mxu0
        %v896 = vsel %vm401, %v724, 0
        %898 = vmatpush.msra.mxu0 0.0
        %899 = vmatpush.msra.mxu0 0.0
        %900 = vmatpush.msra.mxu0 0.0
        %901 = vmatpush.msra.mxu0 0.0
        %902 = vmatpush.msra.mxu0 0.0
        %903 = vmatpush.msra.mxu0 0.0
        %904 = vmatpush.msra.mxu0 0.0
        %905 = vmatpush.msra.mxu0 0.0
        %906 = vmatpush.msra.mxu0 0.0
        %907 = vmatpush.msra.mxu0 0.0
        %908 = vmatpush.msra.mxu0 0.0
        %909 = vmatpush.msra.mxu0 0.0
        %910 = vmatpush.msra.mxu0 0.0
        %911 = vmatpush.msra.mxu0 0.0
        %912 = vmatpush.msra.mxu0 0.0
        %913 = vmatpush.msra.mxu0 %v821
        %914 = vmatmul.f32.gmra.mxu0 %v896
        %v915 = vpop.f32.mrf.mxu0
        %v916 = vadd.f32 0.0, %v915
        %917 = vdwg.mxu0
        %v919 = vsel %vm401, %v747, 0
        %921 = vmatpush.msra.mxu0 0.0
        %922 = vmatpush.msra.mxu0 0.0
        %923 = vmatpush.msra.mxu0 0.0
        %924 = vmatpush.msra.mxu0 0.0
        %925 = vmatpush.msra.mxu0 0.0
        %926 = vmatpush.msra.mxu0 0.0
        %927 = vmatpush.msra.mxu0 0.0
        %928 = vmatpush.msra.mxu0 0.0
        %929 = vmatpush.msra.mxu0 0.0
        %930 = vmatpush.msra.mxu0 0.0
        %931 = vmatpush.msra.mxu0 0.0
        %932 = vmatpush.msra.mxu0 0.0
        %933 = vmatpush.msra.mxu0 0.0
        %934 = vmatpush.msra.mxu0 0.0
        %935 = vmatpush.msra.mxu0 0.0
        %936 = vmatpush.msra.mxu0 %v822
        %937 = vmatmul.f32.gmra.mxu0 %v919
        %v938 = vpop.f32.mrf.mxu0
        %v939 = vadd.f32 0.0, %v938
        %940 = vdwg.mxu0
        %v942 = vsel %vm401, %v770, 0
        %944 = vmatpush.msra.mxu0 0.0
        %945 = vmatpush.msra.mxu0 0.0
        %946 = vmatpush.msra.mxu0 0.0
        %947 = vmatpush.msra.mxu0 0.0
        %948 = vmatpush.msra.mxu0 0.0
        %949 = vmatpush.msra.mxu0 0.0
        %950 = vmatpush.msra.mxu0 0.0
        %951 = vmatpush.msra.mxu0 0.0
        %952 = vmatpush.msra.mxu0 0.0
        %953 = vmatpush.msra.mxu0 0.0
        %954 = vmatpush.msra.mxu0 0.0
        %955 = vmatpush.msra.mxu0 0.0
        %956 = vmatpush.msra.mxu0 0.0
        %957 = vmatpush.msra.mxu0 0.0
        %958 = vmatpush.msra.mxu0 0.0
        %959 = vmatpush.msra.mxu0 %v823
        %960 = vmatmul.f32.gmra.mxu0 %v942
        %v961 = vpop.f32.mrf.mxu0
        %v962 = vadd.f32 0.0, %v961
        %963 = vdwg.mxu0
        %v965 = vsel %vm401, %v793, 0
        %967 = vmatpush.msra.mxu0 0.0
        %968 = vmatpush.msra.mxu0 0.0
        %969 = vmatpush.msra.mxu0 0.0
        %970 = vmatpush.msra.mxu0 0.0
        %971 = vmatpush.msra.mxu0 0.0
        %972 = vmatpush.msra.mxu0 0.0
        %973 = vmatpush.msra.mxu0 0.0
        %974 = vmatpush.msra.mxu0 0.0
        %975 = vmatpush.msra.mxu0 0.0
        %976 = vmatpush.msra.mxu0 0.0
        %977 = vmatpush.msra.mxu0 0.0
        %978 = vmatpush.msra.mxu0 0.0
        %979 = vmatpush.msra.mxu0 0.0
        %980 = vmatpush.msra.mxu0 0.0
        %981 = vmatpush.msra.mxu0 0.0
        %982 = vmatpush.msra.mxu0 %v824
        %983 = vmatmul.f32.gmra.mxu0 %v965
        %v984 = vpop.f32.mrf.mxu0
        %v985 = vadd.f32 0.0, %v984
        %986 = vdwg.mxu0
        %v988 = vsel %vm401, %v816, 0
        %990 = vmatpush.msra.mxu0 0.0
        %991 = vmatpush.msra.mxu0 0.0
        %992 = vmatpush.msra.mxu0 0.0
        %993 = vmatpush.msra.mxu0 0.0
        %994 = vmatpush.msra.mxu0 0.0
        %995 = vmatpush.msra.mxu0 0.0
        %996 = vmatpush.msra.mxu0 0.0
        %997 = vmatpush.msra.mxu0 0.0
        %998 = vmatpush.msra.mxu0 0.0
        %999 = vmatpush.msra.mxu0 0.0
        %1000 = vmatpush.msra.mxu0 0.0
        %1001 = vmatpush.msra.mxu0 0.0
        %1002 = vmatpush.msra.mxu0 0.0
        %1003 = vmatpush.msra.mxu0 0.0
        %1004 = vmatpush.msra.mxu0 0.0
        %1005 = vmatpush.msra.mxu0 %v825
        %1006 = vmatmul.f32.gmra.mxu0 %v988
        %v1007 = vpop.f32.mrf.mxu0
        %v1008 = vadd.f32 0.0, %v1007
        %1009 = vdwg.mxu0
        %v1010 = vsel %vm332, %v847, 0.0
        %v1011 = vsel %vm332, %v870, 0.0
        %v1012 = vadd.f32 %v1010, %v1011
        %v1013 = vsel %vm332, %v893, 0.0
        %v1014 = vadd.f32 %v1012, %v1013
        %v1015 = vsel %vm332, %v916, 0.0
        %v1016 = vadd.f32 %v1014, %v1015
        %v1017 = vsel %vm332, %v939, 0.0
        %v1018 = vadd.f32 %v1016, %v1017
        %v1019 = vsel %vm332, %v962, 0.0
        %v1020 = vadd.f32 %v1018, %v1019
        %v1021 = vsel %vm332, %v985, 0.0
        %v1022 = vadd.f32 %v1020, %v1021
        %v1023 = vsel %vm332, %v1008, 0.0
        %v1024 = vadd.f32 %v1022, %v1023
        %v1025 = vld [vmem:[%s4] sm:$0x1]
        %v1027 = vperm.slane %v1025, 0
        %v1029 = vadd.f32 %v1024, %v1027
        %1030 = vst.msk [vmem:[%s314] sm:$0xff] %vm332, %v1029
        %s1031 = sand.u32 %s147, 1
        %s1032 = scalar_lea.sflag [#allocation4], %s1031
        %s1033 = sand.u32 %s147, 1
        %s1034 = smul.addr %s1033, 8
        %s1035 = scalar_lea.vmem [#allocation10], %s1034
        // Predicated region
        $region57: #{tpu_custom_call.1} parent=39 // pred_check
          %p1036 = pneg %p157
        $region58: #{tpu_custom_call.1} parent=39 // pred_check_branch
          %1038 = sbr.rel (%p1036) target = $region60
        $region59: #{tpu_custom_call.1} parent=39 // pred_region
          %1040 = vsyncadd %s1032, 0
          %s1041 = smul.addr %s24, 8
          %s1042 = scalar_lea.hbm %s5, %s1041
          %s1044 = sshll.u32 %s1035, 4
          %s1045 = int_to_ptr.vmem [resolvable:$true] %s1044
          %s1046 = sshll.u32 %s1042, 4
          %s1047 = int_to_ptr.hbm [resolvable:$true] %s1046
          %1049 = dma.vmem_to_hbm [thread:$0]  %s1045, 128, %s1047, %s1032
        $region60: #{tpu_custom_call.1} parent=39 // pred_fallthru
          _
      $region40: #{tpu_custom_call.1} parent=5 // pred_fallthru
        _
      %p1050 = scmp.le.s32.totalorder 2, %s19
      // Predicated region
      $region61: #{tpu_custom_call.1} parent=5 // pred_check
        %p1051 = pneg %p1050
      $region62: #{tpu_custom_call.1} parent=5 // pred_check_branch
        %1053 = sbr.rel (%p1051) target = $region64
      $region63: #{tpu_custom_call.1} parent=5 // pred_region
        %s1054 = ssub.s32 %s19, 2
        // Predicated region
        $region65: #{tpu_custom_call.1} parent=63 // pred_check
          %p1055 = pneg %p163
        $region66: #{tpu_custom_call.1} parent=63 // pred_check_branch
          %1057 = sbr.rel (%p1055) target = $region68
        $region67: #{tpu_custom_call.1} parent=63 // pred_region
          %s1058 = sand.u32 %s148, 1
          %s1059 = scalar_lea.sflag [#allocation4], %s1058
          %s1060 = sand.u32 %s148, 1
          %s1061 = smul.addr %s1060, 8
          %s1062 = scalar_lea.vmem [#allocation10], %s1061
          %1064 = dma.done %s1059, 128
        $region68: #{tpu_custom_call.1} parent=63 // pred_fallthru
          _
      $region64: #{tpu_custom_call.1} parent=5 // pred_fallthru
        _
    $region6: #{tpu_custom_call.1} parent=1 // loop_footer
      %s23 = sadd.s32 1, %s19
    $region7: #{tpu_custom_call.1} parent=1 // loop_footer_branch
      %18 = sbr.rel target = $region3
    $region8: #{tpu_custom_call.1} parent=1 // loop_exit
      _
    %1065 = vsyncpa [#allocation3], 1
    %s1066 = scalar_lea.sflag [#allocation3], 1
    %1067 = vsyncpa %s1066, 1
    %1068 = vsyncpa [#allocation6], 1
    %s1069 = scalar_lea.sflag [#allocation6], 1
    %1070 = vsyncpa %s1069, 1
    %1071 = vsyncpa [#allocation9], 1
    %1072 = vsyncpa [#allocation4], 1
    %s1073 = scalar_lea.sflag [#allocation4], 1
    %1074 = vsyncpa %s1073, 1

</llo_original>
